<compile_context>
chip_gen: v5e
topology: v5e:2x2
jax: 0.10.0
libtpu: 0.0.40
codegen_flags: <defaults>
</compile_context>

<pallas_src>
import functools
import itertools

import numpy as np
import jax
import jax.numpy as jnp
from jax.experimental import pallas as pl
from jax.experimental.pallas import tpu as pltpu


def _choose_p_tile(P):
    if P % 128 != 0:
        return P                       # full-block fallback
    for cand in (4096, 2048, 1024, 512, 256, 128):
        if P % cand == 0:
            return cand
    return P


def _choose_q_tile(Q):
    if Q <= 256:
        return Q
    for cand in (256, 128, 64, 32, 16):
        if Q % cand == 0:
            return cand
    return Q


def _matcher_cost_kernel(logits_ref, onehot_ref, outm_ref, tgtm_ref, valid_ref,
                         cost_ref, score_ref,
                         acc_mat, acc_neg, acc_sig, acc_t,
                         *, inv_num_points, w_class, w_mask, w_dice):
    k = pl.program_id(2)

    @pl.when(k == 0)
    def _init():
        acc_mat[...] = jnp.zeros_like(acc_mat)
        acc_neg[...] = jnp.zeros_like(acc_neg)
        acc_sig[...] = jnp.zeros_like(acc_sig)
        acc_t[...] = jnp.zeros_like(acc_t)

    # ---- per-P-tile accumulation (hot loop) --------------------------------
    x = outm_ref[0].astype(jnp.float32)          # (Qt, Pt) pred mask logits
    t = tgtm_ref[0]                              # (Pt, Mp) bf16 target masks

    # softplus(x) == BCE-with-logits(x, target=0); target=1 branch folded away
    # algebraically via pos - neg == -x (saves one full MXU matmul).
    neg = jnp.maximum(x, 0.0) + jnp.log(1.0 + jnp.exp(-jnp.abs(x)))
    sig = pl.reciprocal(1.0 + jnp.exp(-x), approx=True)        # sigmoid via EUP

    # One shared-RHS MXU call: rows [0:Qt) -> (-x)·t ; rows [Qt:2Qt) -> sig·t.
    lhs = jnp.concatenate([-x, sig], axis=0).astype(jnp.bfloat16)
    acc_mat[...] += jnp.dot(lhs, t, preferred_element_type=jnp.float32)
    acc_neg[...] += jnp.sum(neg, axis=-1, keepdims=True)        # (Qt, 1)
    acc_sig[...] += jnp.sum(sig, axis=-1, keepdims=True)        # (Qt, 1)
    acc_t[...] += jnp.sum(t.astype(jnp.float32), axis=0, keepdims=True)  # (1, Mp)

    # ---- finalize on the last P tile ---------------------------------------
    @pl.when(k == pl.num_programs(2) - 1)
    def _finalize():
        qt = acc_neg.shape[0]
        logits = logits_ref[0]                   # (Qt, C)
        n_cls = logits.shape[-1]

        mx = jnp.max(logits, axis=-1, keepdims=True)
        e = jnp.exp(logits - mx)
        prob = e * pl.reciprocal(jnp.sum(e, axis=-1, keepdims=True), approx=True)

        oh_t = onehot_ref[0]                     # (C, Mp)
        if n_cls <= 32:
            # tiny class count: VPU broadcast-gather, no degenerate MXU call
            cc = prob[:, 0:1] * oh_t[0:1, :]
            for c in range(1, n_cls):
                cc = cc + prob[:, c:c + 1] * oh_t[c:c + 1, :]
        else:
            cc = jnp.dot(prob, oh_t, preferred_element_type=jnp.float32)
        cost_class = -cc                          # (Qt, Mp)

        am = acc_mat[...]
        negx_t = am[:qt, :]                       # sum_P (-x)·t
        sig_t = am[qt:, :]                        # sum_P sigmoid(x)·t

        cost_mask = (negx_t + acc_neg[...]) * inv_num_points
        denom = acc_sig[...] + acc_t[...]
        cost_dice = 1.0 - (2.0 * sig_t + 1.0) * pl.reciprocal(denom + 1.0,
                                                              approx=True)

        cost = w_mask * cost_mask + w_class * cost_class + w_dice * cost_dice
        valid = valid_ref[0]                      # (1, Mp); 1.0 = valid
        cost_ref[0] = jnp.where(valid > 0.5, cost, 1.0e6)

        # pred score = max over real classes (drop trailing "no object" column)
        score_ref[0] = jnp.max(prob[:, :n_cls - 1], axis=-1, keepdims=True)


def frame_matcher_costs(pred_logits, onehot_t, out_pts, tgt_pts_t, valid,
                        *, cost_class=1.0, cost_mask=1.0, cost_dice=1.0):
    """Batched cost computation. Returns (cost (bs,Q,Mp), score (bs,Q,1))."""
    bs, Q, C = pred_logits.shape
    P = out_pts.shape[-1]
    Mp = tgt_pts_t.shape[-1]

    Pt = _choose_p_tile(P)
    Qt = _choose_q_tile(Q)
    n_q = Q // Qt
    n_k = P // Pt

    kernel = functools.partial(
        _matcher_cost_kernel,
        inv_num_points=1.0 / float(P),
        w_class=float(cost_class), w_mask=float(cost_mask),
        w_dice=float(cost_dice))

    return pl.pallas_call(
        kernel,
        grid=(bs, n_q, n_k),
        in_specs=[
            pl.BlockSpec((1, Qt, C), lambda b, qi, k: (b, qi, 0)),
            pl.BlockSpec((1, C, Mp), lambda b, qi, k: (b, 0, 0)),
            pl.BlockSpec((1, Qt, Pt), lambda b, qi, k: (b, qi, k)),
            pl.BlockSpec((1, Pt, Mp), lambda b, qi, k: (b, k, 0)),
            pl.BlockSpec((1, 1, Mp), lambda b, qi, k: (b, 0, 0)),
        ],
        out_specs=(
            pl.BlockSpec((1, Qt, Mp), lambda b, qi, k: (b, qi, 0)),
            pl.BlockSpec((1, Qt, 1), lambda b, qi, k: (b, qi, 0)),
        ),
        out_shape=(jax.ShapeDtypeStruct((bs, Q, Mp), jnp.float32),
                   jax.ShapeDtypeStruct((bs, Q, 1), jnp.float32)),
        scratch_shapes=[
            pltpu.VMEM((2 * Qt, Mp), jnp.float32),   # [(-x)·t ; sig·t] accumulator
            pltpu.VMEM((Qt, 1), jnp.float32),        # rowsum softplus(x)
            pltpu.VMEM((Qt, 1), jnp.float32),        # rowsum sigmoid(x)
            pltpu.VMEM((1, Mp), jnp.float32),        # colsum targets
        ],
        compiler_params=pltpu.CompilerParams(
            dimension_semantics=("parallel", "parallel", "arbitrary")),
    )(pred_logits, onehot_t, out_pts, tgt_pts_t, valid)


def point_sample(masks, coords):
    """detectron2 point_sample: bilinear grid_sample, align_corners=False,
    zero padding.  masks: (N, H, W) float; coords: (P, 2) = (x, y) in [0, 1].
    Returns (N, P)."""
    # TODO(synk): could be fused into the Pallas kernel via manual DMA gathers
    # of the 4 bilinear corners to avoid the HBM round-trip of the sampled pts.
    N, H, W = masks.shape
    x = coords[:, 0] * W - 0.5
    y = coords[:, 1] * H - 0.5
    x0 = jnp.floor(x)
    y0 = jnp.floor(y)
    x1 = x0 + 1.0
    y1 = y0 + 1.0
    wx1 = x - x0
    wx0 = 1.0 - wx1
    wy1 = y - y0
    wy0 = 1.0 - wy1

    def gather(yi, xi):
        valid = (xi >= 0) & (xi <= W - 1) & (yi >= 0) & (yi <= H - 1)
        xi_c = jnp.clip(xi, 0, W - 1).astype(jnp.int32)
        yi_c = jnp.clip(yi, 0, H - 1).astype(jnp.int32)
        vals = masks[:, yi_c, xi_c]                       # (N, P)
        return jnp.where(valid[None, :], vals, 0.0)

    return (gather(y0, x0) * (wy0 * wx0)[None, :]
            + gather(y0, x1) * (wy0 * wx1)[None, :]
            + gather(y1, x0) * (wy1 * wx0)[None, :]
            + gather(y1, x1) * (wy1 * wx1)[None, :])


def _linear_sum_assignment(C):
    # TODO(synk): scipy's Hungarian algorithm is a sequential host-side solver
    # with no Pallas equivalent; exact brute force is used here (small sizes).
    n, m = C.shape
    best, best_cost = None, np.inf
    if n >= m:
        for perm in itertools.permutations(range(n), m):
            cost = C[list(perm), range(m)].sum()
            if cost < best_cost:
                best_cost, best = cost, (np.array(perm), np.arange(m))
    else:
        for perm in itertools.permutations(range(m), n):
            cost = C[range(n), list(perm)].sum()
            if cost < best_cost:
                best_cost, best = cost, (np.arange(n), np.array(perm))
    return best


def frame_matcher_forward(pred_logits, pred_masks, tgt_labels, tgt_masks,
                          valid_inst, point_keys, num_points, select_thr,
                          cost_class=1.0, cost_mask=1.0, cost_dice=1.0,
                          return_costs=False):
    bs, Q, C_dim = pred_logits.shape
    M = tgt_labels.shape[1]
    Mp = ((M + 127) // 128) * 128            # lane-dense (pad targets to 128)

    # per-frame random point coordinates (matches torch.rand per frame)
    coords = jax.vmap(
        lambda k: jax.random.uniform(k, (num_points, 2), dtype=jnp.float32)
    )(point_keys)                                              # (bs, P, 2)

    out_pts = jax.vmap(point_sample)(pred_masks.astype(jnp.float32), coords)
    tgt_pts = jax.vmap(point_sample)(tgt_masks.astype(jnp.float32), coords)

    # transpose-free, bf16 matmul operands (accumulation stays f32 in-kernel)
    out_pts_bf = out_pts.astype(jnp.bfloat16)                   # (bs, Q, P)
    tgt_pts_t = jnp.transpose(tgt_pts, (0, 2, 1))               # (bs, P, M)
    tgt_pts_t = jnp.pad(tgt_pts_t,
                        ((0, 0), (0, 0), (0, Mp - M))).astype(jnp.bfloat16)

    onehot = jax.nn.one_hot(tgt_labels, C_dim, dtype=jnp.float32)   # (bs, M, C)
    onehot_t = jnp.transpose(onehot, (0, 2, 1))                     # (bs, C, M)
    onehot_t = jnp.pad(onehot_t, ((0, 0), (0, 0), (0, Mp - M)))

    valid_f = jnp.pad(valid_inst.astype(jnp.float32), ((0, 0), (0, Mp - M)))
    valid_f = valid_f[:, None, :]                                   # (bs, 1, Mp)

    # single batched launch; single device->host transfer below
    cost, score = frame_matcher_costs(
        pred_logits.astype(jnp.float32), onehot_t, out_pts_bf, tgt_pts_t,
        valid_f, cost_class=cost_class, cost_mask=cost_mask,
        cost_dice=cost_dice)
    cost, score = jax.block_until_ready((cost, score))

    cost_np = np.asarray(cost)[:, :, :M]
    score_np = np.asarray(score)[:, :, 0]
    valid_np = np.asarray(valid_inst)

    indices, aux_indices, valid_masks = [], [], []
    for b in range(bs):
        C_np = cost_np[b]
        src_i, tgt_i = _linear_sum_assignment(C_np)
        order = np.argsort(tgt_i)
        src_i, tgt_i = src_i[order], tgt_i[order]
        src_i, tgt_i = src_i[valid_np[b]], tgt_i[valid_np[b]]
        indices.append((src_i.astype(np.int64), tgt_i.astype(np.int64)))

        valid_mask = np.zeros((Q,), dtype=np.float32)
        valid_mask[src_i] = 1
        valid_mask[score_np[b] > select_thr] = 1
        valid_mask = valid_mask.astype(bool)
        valid_masks.append(valid_mask)

        aux_src_i = np.arange(Q)
        aux_tgt_i = np.argmin(C_np, axis=1)   # NOTE: mirrors original semantics
        aux_tgt_i[src_i] = tgt_i
        aux_tgt_i[~valid_mask] = -1
        aux_indices.append((aux_src_i.astype(np.int64),
                            aux_tgt_i.astype(np.int64)))

    if return_costs:
        return indices, aux_indices, valid_masks, cost_np, score_np, coords
    return indices, aux_indices, valid_masks


if __name__ == "__main__":
    key = jax.random.PRNGKey(0)
    bs, Q, num_classes = 2, 16, 5
    C_dim = num_classes + 1           # includes the "no object" class
    H = W = 16
    M = 4                             # targets per frame
    P = 384                           # sampled points -> 3 P-tiles of 128
    select_thr = 0.5

    k1, k2, k3, k4, k5 = jax.random.split(key, 5)
    pred_logits = jax.random.normal(k1, (bs, Q, C_dim), dtype=jnp.float32)
    pred_masks = jax.random.normal(k2, (bs, Q, H, W), dtype=jnp.float32)
    tgt_labels = jax.random.randint(k3, (bs, M), 0, num_classes)
    tgt_masks = (jax.random.uniform(k4, (bs, M, H, W)) > 0.5).astype(
        jnp.float32)
    valid_inst = jnp.array([[True, True, True, False],
                            [True, False, True, True]])
    point_keys = jax.random.split(k5, bs)

    (indices, aux_indices, valid_masks,
     cost_np, score_np, coords) = frame_matcher_forward(
        pred_logits, pred_masks, tgt_labels, tgt_masks, valid_inst,
        point_keys, P, select_thr, return_costs=True)

    # ---- pure-JAX f32 reference check (exact softmax / sigmoid) ------------
    def ref_costs(logits, labels, out_p, tgt_p, valid):
        prob = jax.nn.softmax(logits, axis=-1)
        cc = -prob[:, labels]
        pos = jnp.maximum(-out_p, 0.0) + jnp.log1p(jnp.exp(-jnp.abs(out_p)))
        neg = jnp.maximum(out_p, 0.0) + jnp.log1p(jnp.exp(-jnp.abs(out_p)))
        cm = (pos @ tgt_p.T + neg @ (1.0 - tgt_p).T) / out_p.shape[1]
        sig = jax.nn.sigmoid(out_p)
        num = 2.0 * (sig @ tgt_p.T)
        den = sig.sum(-1)[:, None] + tgt_p.sum(-1)[None, :]
        cd = 1.0 - (num + 1.0) / (den + 1.0)
        Cm = cm + cc + cd
        Cm = jnp.where(valid[None, :], Cm, 1.0e6)
        return Cm, jnp.max(prob[:, :-1], axis=-1)

    for b in range(bs):
        out_p = point_sample(pred_masks[b].astype(jnp.float32), coords[b])
        tgt_p = point_sample(tgt_masks[b].astype(jnp.float32), coords[b])
        C_ref, s_ref = ref_costs(pred_logits[b], tgt_labels[b], out_p, tgt_p,
                                 valid_inst[b])
        np.testing.assert_allclose(cost_np[b], np.asarray(C_ref),
                                   rtol=0.1, atol=0.1)
        np.testing.assert_allclose(score_np[b], np.asarray(s_ref),
                                   rtol=0.05, atol=0.05)

    # sanity: results exist and have consistent shapes
    assert len(indices) == bs and len(aux_indices) == bs
    assert all(vm.shape == (Q,) for vm in valid_masks)
    assert all(a.shape == (Q,) and t.shape == (Q,) for a, t in aux_indices)

    print("KERNEL_OK")
</pallas_src>

<mosaic_0001>
module attributes {stable_mosaic.version = 11 : i64} {
  func.func @_matcher_cost_kernel(%arg0: i32, %arg1: i32, %arg2: i32, %arg3: memref<1x16x6xf32, #tpu.memory_space<vmem>>, %arg4: memref<1x6x128xf32, #tpu.memory_space<vmem>>, %arg5: memref<1x16x128xbf16, #tpu.memory_space<vmem>>, %arg6: memref<1x128x128xbf16, #tpu.memory_space<vmem>>, %arg7: memref<1x1x128xf32, #tpu.memory_space<vmem>>, %arg8: memref<1x16x128xf32, #tpu.memory_space<vmem>>, %arg9: memref<1x16x1xf32, #tpu.memory_space<vmem>>, %arg10: memref<32x128xf32, #tpu.memory_space<vmem>>, %arg11: memref<16x1xf32, #tpu.memory_space<vmem>>, %arg12: memref<16x1xf32, #tpu.memory_space<vmem>>, %arg13: memref<1x128xf32, #tpu.memory_space<vmem>>) attributes {dimension_semantics = [#tpu.dimension_semantics<parallel>, #tpu.dimension_semantics<parallel>, #tpu.dimension_semantics<arbitrary>], iteration_bounds = array<i64: 2, 1, 3>, scalar_prefetch = 0 : i64, scratch_operands = 4 : i64, tpu.core_type = #tpu.core_type<tc>, window_params = [{transform_indices = @transform_0, window_bounds = array<i64: 1, 16, 6>}, {transform_indices = @transform_1, window_bounds = array<i64: 1, 6, 128>}, {transform_indices = @transform_2, window_bounds = array<i64: 1, 16, 128>}, {transform_indices = @transform_3, window_bounds = array<i64: 1, 128, 128>}, {transform_indices = @transform_4, window_bounds = array<i64: 1, 1, 128>}, {transform_indices = @transform_5, window_bounds = array<i64: 1, 16, 128>}, {transform_indices = @transform_6, window_bounds = array<i64: 1, 16, 1>}]} {
    %c0_i32 = arith.constant 0 : i32
    %0 = arith.cmpi eq, %arg2, %c0_i32 : i32
    %1 = arith.extui %0 : i1 to i32
    %c0_i32_0 = arith.constant 0 : i32
    %2 = arith.cmpi ne, %1, %c0_i32_0 : i32
    scf.if %2 {
      %cst_32 = arith.constant 0.000000e+00 : f32
      %51 = vector.broadcast %cst_32 : f32 to vector<32x128xf32>
      %c0_33 = arith.constant 0 : index
      %c0_34 = arith.constant 0 : index
      %52 = vector.load %arg10[%c0_33, %c0_34] : memref<32x128xf32, #tpu.memory_space<vmem>>, vector<32x128xf32>
      tpu.vector_store %arg10[%c0_33, %c0_34], %51 {strides = array<i32>} : memref<32x128xf32, #tpu.memory_space<vmem>>, vector<32x128xf32>,
      %cst_35 = arith.constant 0.000000e+00 : f32
      %53 = vector.broadcast %cst_35 : f32 to vector<16x1xf32>
      %c0_36 = arith.constant 0 : index
      %c0_37 = arith.constant 0 : index
      %54 = vector.load %arg11[%c0_36, %c0_37] : memref<16x1xf32, #tpu.memory_space<vmem>>, vector<16x1xf32>
      tpu.vector_store %arg11[%c0_36, %c0_37], %53 {strides = array<i32>} : memref<16x1xf32, #tpu.memory_space<vmem>>, vector<16x1xf32>,
      %cst_38 = arith.constant 0.000000e+00 : f32
      %55 = vector.broadcast %cst_38 : f32 to vector<16x1xf32>
      %c0_39 = arith.constant 0 : index
      %c0_40 = arith.constant 0 : index
      %56 = vector.load %arg12[%c0_39, %c0_40] : memref<16x1xf32, #tpu.memory_space<vmem>>, vector<16x1xf32>
      tpu.vector_store %arg12[%c0_39, %c0_40], %55 {strides = array<i32>} : memref<16x1xf32, #tpu.memory_space<vmem>>, vector<16x1xf32>,
      %cst_41 = arith.constant 0.000000e+00 : f32
      %57 = vector.broadcast %cst_41 : f32 to vector<1x128xf32>
      %c0_42 = arith.constant 0 : index
      %c0_43 = arith.constant 0 : index
      %58 = vector.load %arg13[%c0_42, %c0_43] : memref<1x128xf32, #tpu.memory_space<vmem>>, vector<1x128xf32>
      tpu.vector_store %arg13[%c0_42, %c0_43], %57 {strides = array<i32>} : memref<1x128xf32, #tpu.memory_space<vmem>>, vector<1x128xf32>,
    } else {
    }
    %c0 = arith.constant 0 : index
    %c0_1 = arith.constant 0 : index
    %c0_2 = arith.constant 0 : index
    %3 = vector.load %arg5[%c0, %c0_1, %c0_2] : memref<1x16x128xbf16, #tpu.memory_space<vmem>>, vector<1x16x128xbf16>
    %4 = vector.shape_cast %3 : vector<1x16x128xbf16> to vector<16x128xbf16>
    %5 = arith.extf %4 : vector<16x128xbf16> to vector<16x128xf32>
    %c0_3 = arith.constant 0 : index
    %c0_4 = arith.constant 0 : index
    %c0_5 = arith.constant 0 : index
    %6 = vector.load %arg6[%c0_3, %c0_4, %c0_5] : memref<1x128x128xbf16, #tpu.memory_space<vmem>>, vector<1x128x128xbf16>
    %7 = vector.shape_cast %6 : vector<1x128x128xbf16> to vector<128x128xbf16>
    %cst = arith.constant 0.000000e+00 : f32
    %8 = vector.broadcast %cst : f32 to vector<16x128xf32>
    %9 = arith.maximumf %5, %8 : vector<16x128xf32>
    %10 = math.absf %5 : vector<16x128xf32>
    %cst_6 = arith.constant 0.000000e+00 : f32
    %11 = vector.broadcast %cst_6 : f32 to vector<16x128xf32>
    %12 = arith.subf %11, %10 : vector<16x128xf32>
    %13 = math.exp %12 : vector<16x128xf32>
    %cst_7 = arith.constant 1.000000e+00 : f32
    %14 = vector.broadcast %cst_7 : f32 to vector<16x128xf32>
    %15 = arith.addf %14, %13 : vector<16x128xf32>
    %16 = math.log %15 : vector<16x128xf32>
    %17 = arith.addf %9, %16 : vector<16x128xf32>
    %cst_8 = arith.constant 0.000000e+00 : f32
    %18 = vector.broadcast %cst_8 : f32 to vector<16x128xf32>
    %19 = arith.subf %18, %5 : vector<16x128xf32>
    %20 = math.exp %19 : vector<16x128xf32>
    %cst_9 = arith.constant 1.000000e+00 : f32
    %21 = vector.broadcast %cst_9 : f32 to vector<16x128xf32>
    %22 = arith.addf %21, %20 : vector<16x128xf32>
    %23 = tpu.reciprocal %22 {approx = true} : vector<16x128xf32> -> vector<16x128xf32>
    %cst_10 = arith.constant 0.000000e+00 : f32
    %24 = vector.broadcast %cst_10 : f32 to vector<16x128xf32>
    %25 = arith.subf %24, %5 : vector<16x128xf32>
    %26 = tpu.concatenate %25, %23 in 0 : vector<16x128xf32>, vector<16x128xf32> -> vector<32x128xf32>
    %27 = arith.truncf %26 : vector<32x128xf32> to vector<32x128xbf16>
    %c0_11 = arith.constant 0 : index
    %c0_12 = arith.constant 0 : index
    %28 = vector.load %arg10[%c0_11, %c0_12] : memref<32x128xf32, #tpu.memory_space<vmem>>, vector<32x128xf32>
    %cst_13 = arith.constant dense<0.000000e+00> : vector<32x128xf32>
    %29 = tpu.matmul %27, %7, %cst_13 {dimension_numbers = #tpu.dot_dimension_numbers<[1], [0], [0], [1], [0, 0, 1, 1], [], []>} : vector<32x128xbf16>, vector<128x128xbf16>, vector<32x128xf32> -> vector<32x128xf32>
    %30 = arith.addf %28, %29 : vector<32x128xf32>
    %c0_14 = arith.constant 0 : index
    %c0_15 = arith.constant 0 : index
    %31 = vector.load %arg10[%c0_14, %c0_15] : memref<32x128xf32, #tpu.memory_space<vmem>>, vector<32x128xf32>
    tpu.vector_store %arg10[%c0_14, %c0_15], %30 {strides = array<i32>} : memref<32x128xf32, #tpu.memory_space<vmem>>, vector<32x128xf32>,
    %c0_16 = arith.constant 0 : index
    %c0_17 = arith.constant 0 : index
    %32 = vector.load %arg11[%c0_16, %c0_17] : memref<16x1xf32, #tpu.memory_space<vmem>>, vector<16x1xf32>
    %cst_18 = arith.constant dense<0.000000e+00> : vector<16xf32>
    %33 = vector.multi_reduction <add>, %17, %cst_18 [1] : vector<16x128xf32> to vector<16xf32>
    %34 = vector.shape_cast %33 : vector<16xf32> to vector<16x1xf32>
    %35 = arith.addf %32, %34 : vector<16x1xf32>
    %c0_19 = arith.constant 0 : index
    %c0_20 = arith.constant 0 : index
    %36 = vector.load %arg11[%c0_19, %c0_20] : memref<16x1xf32, #tpu.memory_space<vmem>>, vector<16x1xf32>
    tpu.vector_store %arg11[%c0_19, %c0_20], %35 {strides = array<i32>} : memref<16x1xf32, #tpu.memory_space<vmem>>, vector<16x1xf32>,
    %c0_21 = arith.constant 0 : index
    %c0_22 = arith.constant 0 : index
    %37 = vector.load %arg12[%c0_21, %c0_22] : memref<16x1xf32, #tpu.memory_space<vmem>>, vector<16x1xf32>
    %cst_23 = arith.constant dense<0.000000e+00> : vector<16xf32>
    %38 = vector.multi_reduction <add>, %23, %cst_23 [1] : vector<16x128xf32> to vector<16xf32>
    %39 = vector.shape_cast %38 : vector<16xf32> to vector<16x1xf32>
    %40 = arith.addf %37, %39 : vector<16x1xf32>
    %c0_24 = arith.constant 0 : index
    %c0_25 = arith.constant 0 : index
    %41 = vector.load %arg12[%c0_24, %c0_25] : memref<16x1xf32, #tpu.memory_space<vmem>>, vector<16x1xf32>
    tpu.vector_store %arg12[%c0_24, %c0_25], %40 {strides = array<i32>} : memref<16x1xf32, #tpu.memory_space<vmem>>, vector<16x1xf32>,
    %c0_26 = arith.constant 0 : index
    %c0_27 = arith.constant 0 : index
    %42 = vector.load %arg13[%c0_26, %c0_27] : memref<1x128xf32, #tpu.memory_space<vmem>>, vector<1x128xf32>
    %43 = arith.extf %7 : vector<128x128xbf16> to vector<128x128xf32>
    %cst_28 = arith.constant dense<0.000000e+00> : vector<128xf32>
    %44 = vector.multi_reduction <add>, %43, %cst_28 [0] : vector<128x128xf32> to vector<128xf32>
    %45 = vector.shape_cast %44 : vector<128xf32> to vector<1x128xf32>
    %46 = arith.addf %42, %45 : vector<1x128xf32>
    %c0_29 = arith.constant 0 : index
    %c0_30 = arith.constant 0 : index
    %47 = vector.load %arg13[%c0_29, %c0_30] : memref<1x128xf32, #tpu.memory_space<vmem>>, vector<1x128xf32>
    tpu.vector_store %arg13[%c0_29, %c0_30], %46 {strides = array<i32>} : memref<1x128xf32, #tpu.memory_space<vmem>>, vector<1x128xf32>,
    %c2_i32 = arith.constant 2 : i32
    %48 = arith.cmpi eq, %arg2, %c2_i32 : i32
    %49 = arith.extui %48 : i1 to i32
    %c0_i32_31 = arith.constant 0 : i32
    %50 = arith.cmpi ne, %49, %c0_i32_31 : i32
    scf.if %50 {
      %c0_32 = arith.constant 0 : index
      %c0_33 = arith.constant 0 : index
      %c0_34 = arith.constant 0 : index
      %51 = vector.load %arg3[%c0_32, %c0_33, %c0_34] : memref<1x16x6xf32, #tpu.memory_space<vmem>>, vector<1x16x6xf32>
      %52 = vector.shape_cast %51 : vector<1x16x6xf32> to vector<16x6xf32>
      %cst_35 = arith.constant dense<0xFF800000> : vector<16xf32>
      %53 = vector.multi_reduction <maximumf>, %52, %cst_35 [1] : vector<16x6xf32> to vector<16xf32>
      %54 = vector.shape_cast %53 : vector<16xf32> to vector<16x1xf32>
      %55 = vector.broadcast %54 : vector<16x1xf32> to vector<16x6xf32>
      %56 = arith.subf %52, %55 : vector<16x6xf32>
      %57 = math.exp %56 : vector<16x6xf32>
      %cst_36 = arith.constant dense<0.000000e+00> : vector<16xf32>
      %58 = vector.multi_reduction <add>, %57, %cst_36 [1] : vector<16x6xf32> to vector<16xf32>
      %59 = vector.shape_cast %58 : vector<16xf32> to vector<16x1xf32>
      %60 = tpu.reciprocal %59 {approx = true} : vector<16x1xf32> -> vector<16x1xf32>
      %61 = vector.broadcast %60 : vector<16x1xf32> to vector<16x6xf32>
      %62 = arith.mulf %57, %61 : vector<16x6xf32>
      %c0_37 = arith.constant 0 : index
      %c0_38 = arith.constant 0 : index
      %c0_39 = arith.constant 0 : index
      %63 = vector.load %arg4[%c0_37, %c0_38, %c0_39] : memref<1x6x128xf32, #tpu.memory_space<vmem>>, vector<1x6x128xf32>
      %64 = vector.shape_cast %63 : vector<1x6x128xf32> to vector<6x128xf32>
      %65 = vector.extract_strided_slice %62 {offsets = [0, 0], sizes = [16, 1], strides = [1, 1]} : vector<16x6xf32> to vector<16x1xf32>
      %66 = vector.extract_strided_slice %64 {offsets = [0, 0], sizes = [1, 128], strides = [1, 1]} : vector<6x128xf32> to vector<1x128xf32>
      %67 = vector.broadcast %65 : vector<16x1xf32> to vector<16x128xf32>
      %68 = vector.broadcast %66 : vector<1x128xf32> to vector<16x128xf32>
      %69 = arith.mulf %67, %68 : vector<16x128xf32>
      %70 = vector.extract_strided_slice %62 {offsets = [0, 1], sizes = [16, 1], strides = [1, 1]} : vector<16x6xf32> to vector<16x1xf32>
      %71 = vector.extract_strided_slice %64 {offsets = [1, 0], sizes = [1, 128], strides = [1, 1]} : vector<6x128xf32> to vector<1x128xf32>
      %72 = vector.broadcast %70 : vector<16x1xf32> to vector<16x128xf32>
      %73 = vector.broadcast %71 : vector<1x128xf32> to vector<16x128xf32>
      %74 = arith.mulf %72, %73 : vector<16x128xf32>
      %75 = arith.addf %69, %74 : vector<16x128xf32>
      %76 = vector.extract_strided_slice %62 {offsets = [0, 2], sizes = [16, 1], strides = [1, 1]} : vector<16x6xf32> to vector<16x1xf32>
      %77 = vector.extract_strided_slice %64 {offsets = [2, 0], sizes = [1, 128], strides = [1, 1]} : vector<6x128xf32> to vector<1x128xf32>
      %78 = vector.broadcast %76 : vector<16x1xf32> to vector<16x128xf32>
      %79 = vector.broadcast %77 : vector<1x128xf32> to vector<16x128xf32>
      %80 = arith.mulf %78, %79 : vector<16x128xf32>
      %81 = arith.addf %75, %80 : vector<16x128xf32>
      %82 = vector.extract_strided_slice %62 {offsets = [0, 3], sizes = [16, 1], strides = [1, 1]} : vector<16x6xf32> to vector<16x1xf32>
      %83 = vector.extract_strided_slice %64 {offsets = [3, 0], sizes = [1, 128], strides = [1, 1]} : vector<6x128xf32> to vector<1x128xf32>
      %84 = vector.broadcast %82 : vector<16x1xf32> to vector<16x128xf32>
      %85 = vector.broadcast %83 : vector<1x128xf32> to vector<16x128xf32>
      %86 = arith.mulf %84, %85 : vector<16x128xf32>
      %87 = arith.addf %81, %86 : vector<16x128xf32>
      %88 = vector.extract_strided_slice %62 {offsets = [0, 4], sizes = [16, 1], strides = [1, 1]} : vector<16x6xf32> to vector<16x1xf32>
      %89 = vector.extract_strided_slice %64 {offsets = [4, 0], sizes = [1, 128], strides = [1, 1]} : vector<6x128xf32> to vector<1x128xf32>
      %90 = vector.broadcast %88 : vector<16x1xf32> to vector<16x128xf32>
      %91 = vector.broadcast %89 : vector<1x128xf32> to vector<16x128xf32>
      %92 = arith.mulf %90, %91 : vector<16x128xf32>
      %93 = arith.addf %87, %92 : vector<16x128xf32>
      %94 = vector.extract_strided_slice %62 {offsets = [0, 5], sizes = [16, 1], strides = [1, 1]} : vector<16x6xf32> to vector<16x1xf32>
      %95 = vector.extract_strided_slice %64 {offsets = [5, 0], sizes = [1, 128], strides = [1, 1]} : vector<6x128xf32> to vector<1x128xf32>
      %96 = vector.broadcast %94 : vector<16x1xf32> to vector<16x128xf32>
      %97 = vector.broadcast %95 : vector<1x128xf32> to vector<16x128xf32>
      %98 = arith.mulf %96, %97 : vector<16x128xf32>
      %99 = arith.addf %93, %98 : vector<16x128xf32>
      %cst_40 = arith.constant 0.000000e+00 : f32
      %100 = vector.broadcast %cst_40 : f32 to vector<16x128xf32>
      %101 = arith.subf %100, %99 : vector<16x128xf32>
      %c0_41 = arith.constant 0 : index
      %c0_42 = arith.constant 0 : index
      %102 = vector.load %arg10[%c0_41, %c0_42] : memref<32x128xf32, #tpu.memory_space<vmem>>, vector<32x128xf32>
      %103 = vector.extract_strided_slice %102 {offsets = [0, 0], sizes = [16, 128], strides = [1, 1]} : vector<32x128xf32> to vector<16x128xf32>
      %104 = vector.extract_strided_slice %102 {offsets = [16, 0], sizes = [16, 128], strides = [1, 1]} : vector<32x128xf32> to vector<16x128xf32>
      %c0_43 = arith.constant 0 : index
      %c0_44 = arith.constant 0 : index
      %105 = vector.load %arg11[%c0_43, %c0_44] : memref<16x1xf32, #tpu.memory_space<vmem>>, vector<16x1xf32>
      %106 = vector.broadcast %105 : vector<16x1xf32> to vector<16x128xf32>
      %107 = arith.addf %103, %106 : vector<16x128xf32>
      %cst_45 = arith.constant 0.00260416674 : f32
      %108 = vector.broadcast %cst_45 : f32 to vector<16x128xf32>
      %109 = arith.mulf %107, %108 : vector<16x128xf32>
      %c0_46 = arith.constant 0 : index
      %c0_47 = arith.constant 0 : index
      %110 = vector.load %arg12[%c0_46, %c0_47] : memref<16x1xf32, #tpu.memory_space<vmem>>, vector<16x1xf32>
      %c0_48 = arith.constant 0 : index
      %c0_49 = arith.constant 0 : index
      %111 = vector.load %arg13[%c0_48, %c0_49] : memref<1x128xf32, #tpu.memory_space<vmem>>, vector<1x128xf32>
      %112 = vector.broadcast %110 : vector<16x1xf32> to vector<16x128xf32>
      %113 = vector.broadcast %111 : vector<1x128xf32> to vector<16x128xf32>
      %114 = arith.addf %112, %113 : vector<16x128xf32>
      %cst_50 = arith.constant 2.000000e+00 : f32
      %115 = vector.broadcast %cst_50 : f32 to vector<16x128xf32>
      %116 = arith.mulf %115, %104 : vector<16x128xf32>
      %cst_51 = arith.constant 1.000000e+00 : f32
      %117 = vector.broadcast %cst_51 : f32 to vector<16x128xf32>
      %118 = arith.addf %116, %117 : vector<16x128xf32>
      %cst_52 = arith.constant 1.000000e+00 : f32
      %119 = vector.broadcast %cst_52 : f32 to vector<16x128xf32>
      %120 = arith.addf %114, %119 : vector<16x128xf32>
      %121 = tpu.reciprocal %120 {approx = true} : vector<16x128xf32> -> vector<16x128xf32>
      %122 = arith.mulf %118, %121 : vector<16x128xf32>
      %cst_53 = arith.constant 1.000000e+00 : f32
      %123 = vector.broadcast %cst_53 : f32 to vector<16x128xf32>
      %124 = arith.subf %123, %122 : vector<16x128xf32>
      %cst_54 = arith.constant 1.000000e+00 : f32
      %125 = vector.broadcast %cst_54 : f32 to vector<16x128xf32>
      %126 = arith.mulf %125, %109 : vector<16x128xf32>
      %cst_55 = arith.constant 1.000000e+00 : f32
      %127 = vector.broadcast %cst_55 : f32 to vector<16x128xf32>
      %128 = arith.mulf %127, %101 : vector<16x128xf32>
      %129 = arith.addf %126, %128 : vector<16x128xf32>
      %cst_56 = arith.constant 1.000000e+00 : f32
      %130 = vector.broadcast %cst_56 : f32 to vector<16x128xf32>
      %131 = arith.mulf %130, %124 : vector<16x128xf32>
      %132 = arith.addf %129, %131 : vector<16x128xf32>
      %c0_57 = arith.constant 0 : index
      %c0_58 = arith.constant 0 : index
      %c0_59 = arith.constant 0 : index
      %133 = vector.load %arg7[%c0_57, %c0_58, %c0_59] : memref<1x1x128xf32, #tpu.memory_space<vmem>>, vector<1x1x128xf32>
      %134 = vector.shape_cast %133 : vector<1x1x128xf32> to vector<1x128xf32>
      %cst_60 = arith.constant 5.000000e-01 : f32
      %135 = vector.broadcast %cst_60 : f32 to vector<1x128xf32>
      %136 = arith.cmpf ogt, %134, %135 : vector<1x128xf32>
      %cst_61 = arith.constant 1.000000e+06 : f32
      %137 = vector.shape_cast %136 : vector<1x128xi1> to vector<1x128xi1>
      %138 = vector.broadcast %137 : vector<1x128xi1> to vector<16x128xi1>
      %139 = vector.broadcast %cst_61 : f32 to vector<16x128xf32>
      %140 = arith.select %138, %132, %139 : vector<16x128xi1>, vector<16x128xf32>
      %c0_62 = arith.constant 0 : index
      %c0_63 = arith.constant 0 : index
      %c0_64 = arith.constant 0 : index
      %141 = vector.load %arg8[%c0_62, %c0_63, %c0_64] : memref<1x16x128xf32, #tpu.memory_space<vmem>>, vector<1x16x128xf32>
      %142 = vector.shape_cast %141 : vector<1x16x128xf32> to vector<16x128xf32>
      %143 = vector.shape_cast %140 : vector<16x128xf32> to vector<1x16x128xf32>
      tpu.vector_store %arg8[%c0_62, %c0_63, %c0_64], %143 {strides = array<i32>} : memref<1x16x128xf32, #tpu.memory_space<vmem>>, vector<1x16x128xf32>,
      %144 = vector.extract_strided_slice %62 {offsets = [0, 0], sizes = [16, 5], strides = [1, 1]} : vector<16x6xf32> to vector<16x5xf32>
      %cst_65 = arith.constant dense<0xFF800000> : vector<16xf32>
      %145 = vector.multi_reduction <maximumf>, %144, %cst_65 [1] : vector<16x5xf32> to vector<16xf32>
      %146 = vector.shape_cast %145 : vector<16xf32> to vector<16x1xf32>
      %c0_66 = arith.constant 0 : index
      %c0_67 = arith.constant 0 : index
      %c0_68 = arith.constant 0 : index
      %147 = vector.load %arg9[%c0_66, %c0_67, %c0_68] : memref<1x16x1xf32, #tpu.memory_space<vmem>>, vector<1x16x1xf32>
      %148 = vector.shape_cast %147 : vector<1x16x1xf32> to vector<16x1xf32>
      %149 = vector.shape_cast %146 : vector<16x1xf32> to vector<1x16x1xf32>
      tpu.vector_store %arg9[%c0_66, %c0_67, %c0_68], %149 {strides = array<i32>} : memref<1x16x1xf32, #tpu.memory_space<vmem>>, vector<1x16x1xf32>,
    } else {
    }
    return
  }
  func.func @transform_0(%arg0: i32, %arg1: i32, %arg2: i32) -> (i32, i32, i32) {
    %c0_i32 = arith.constant 0 : i32
    %c0_i32_0 = arith.constant 0 : i32
    return %arg0, %arg1, %c0_i32 : i32, i32, i32
  }
  func.func @transform_1(%arg0: i32, %arg1: i32, %arg2: i32) -> (i32, i32, i32) {
    %c0_i32 = arith.constant 0 : i32
    %c0_i32_0 = arith.constant 0 : i32
    %c0_i32_1 = arith.constant 0 : i32
    return %arg0, %c0_i32, %c0_i32_0 : i32, i32, i32
  }
  func.func @transform_2(%arg0: i32, %arg1: i32, %arg2: i32) -> (i32, i32, i32) {
    %c0_i32 = arith.constant 0 : i32
    return %arg0, %arg1, %arg2 : i32, i32, i32
  }
  func.func @transform_3(%arg0: i32, %arg1: i32, %arg2: i32) -> (i32, i32, i32) {
    %c0_i32 = arith.constant 0 : i32
    %c0_i32_0 = arith.constant 0 : i32
    return %arg0, %arg2, %c0_i32 : i32, i32, i32
  }
  func.func @transform_4(%arg0: i32, %arg1: i32, %arg2: i32) -> (i32, i32, i32) {
    %c0_i32 = arith.constant 0 : i32
    %c0_i32_0 = arith.constant 0 : i32
    %c0_i32_1 = arith.constant 0 : i32
    return %arg0, %c0_i32, %c0_i32_0 : i32, i32, i32
  }
  func.func @transform_5(%arg0: i32, %arg1: i32, %arg2: i32) -> (i32, i32, i32) {
    %c0_i32 = arith.constant 0 : i32
    %c0_i32_0 = arith.constant 0 : i32
    return %arg0, %arg1, %c0_i32 : i32, i32, i32
  }
  func.func @transform_6(%arg0: i32, %arg1: i32, %arg2: i32) -> (i32, i32, i32) {
    %c0_i32 = arith.constant 0 : i32
    %c0_i32_0 = arith.constant 0 : i32
    return %arg0, %arg1, %c0_i32 : i32, i32, i32
  }
}

</mosaic_0001>

<llo_original>
// kernel: tpu_custom_call.1
$region0: #{tpu_custom_call.1}
  #allocation0 [shape = 'u32[]', space=smem, size = 0x4, offset = 0x4, fixed_abs, tag = 'smem constant byte address 0x4 - core index']
  #allocation1 [shape = 'u32[72,128]{1,0:T(1,128)}', space=vmem, size = 0x9000, scoped, tag = 'internal scratch']
  #allocation2 [shape = 'f32[32,128]{1,0:T(8,128)}', space=vmem, size = 0x4000, scoped, tag = 'scratch operand']
  #allocation3 [shape = 'f32[16,1]{1,0:T(8,128)}', space=vmem, size = 0x2000, scoped, tag = 'scratch operand']
  #allocation4 [shape = 'f32[16,1]{1,0:T(8,128)}', space=vmem, size = 0x2000, scoped, tag = 'scratch operand']
  #allocation5 [shape = 'f32[1,128]{1,0:T(1,128)}', space=vmem, size = 0x200, scoped, tag = 'scratch operand']
  %s0 = inlined_call_operand.vmem [shape: f32[2,16,6], index: 0, kind: input, shape index: {}]
  %s1 = inlined_call_operand.vmem [shape: f32[2,6,128], index: 1, kind: input, shape index: {}]
  %s2 = inlined_call_operand.vmem [shape: bf16[2,16,384], index: 2, kind: input, shape index: {}]
  %s3 = inlined_call_operand.hbm [shape: bf16[2,384,128], index: 3, kind: input, shape index: {}]
  %s4 = inlined_call_operand.vmem [shape: f32[2,1,128], index: 4, kind: input, shape index: {}]
  %s5 = inlined_call_operand.hbm [shape: f32[2,16,128], index: 5, kind: output, shape index: {0}]
  %s6 = inlined_call_operand.vmem [shape: f32[2,16,1], index: 6, kind: output, shape index: {1}]
  %7 = xla_tuple %s5, %s6
  %s8 = sld [smem:[#allocation0]]
  $region114: #{tpu_custom_call.1} parent=0
    _
  %s10 = ssub.s32 1, %s8
  %s11 = scalar_select 0, %s10, %s8
  $region1: #{tpu_custom_call.1} parent=0
    #allocation6 [shape = 'u8[8192]{0}', space=vmem, size = 0x2000, scoped, tag = 'input window, operand 2']
    #allocation7 [shape = 'u8[65536]{0}', space=vmem, size = 0x10000, scoped, tag = 'input window, operand 3']
    #allocation8 [shape = 's32[2]{0}', space=sflag, size = 0x8, scoped, tag = 'scoped memory for tpu_custom_call.1']
    #allocation9 [shape = 's32[2]{0}', space=sflag, size = 0x8, scoped, tag = 'scoped memory for tpu_custom_call.1']
    #allocation10 [shape = 'u8[16384]{0}', space=vmem, size = 0x4000, scoped, tag = 'output window, operand 0']
    %12 = vsyncpa [#allocation8], 0
    %s13 = scalar_lea.sflag [#allocation8], 1
    %14 = vsyncpa %s13, 0
    %15 = vsyncpa [#allocation9], 0
    %s16 = scalar_lea.sflag [#allocation9], 1
    %17 = vsyncpa %s16, 0
    loop: start=0, step=1, limit=8
    $region2: #{tpu_custom_call.1} parent=1 // loop_pre_header
      _
    $region3: #{tpu_custom_call.1} parent=1 // loop_header
      %s19 = sphi 0, %s23
      %p20 = scmp.ge.s32.totalorder %s19, 8
      %s26 = sphi 0, %s45
      %s27 = sphi 0, %s41
      %s28 = sphi 0, %s37
      %s29 = sphi 0, %s26
      %s30 = sphi 0, %s27
      %s31 = sphi 0, %s28
      %s32 = sphi 0, %s29
      %s33 = sphi 0, %s30
      %s34 = sphi 0, %s31
      %s50 = sphi 0, %s52
      %s53 = sphi 0, %s50
      %s54 = sphi 0, %s53
      %s70 = sphi 0, %s54
      %s76 = sphi 0, %s78
      %s79 = sphi 0, %s76
      %s80 = sphi 0, %s79
      %s96 = sphi 0, %s80
      %s106 = sphi 0, %s108
      %s109 = sphi 0, %s106
      %s110 = sphi 0, %s109
      %s126 = sphi 0, %s110
      %s134 = sphi 0, %s136
      %s137 = sphi 0, %s134
      %s138 = sphi 0, %s137
      %s154 = sphi 0, %s138
      %s160 = sphi 0, %s162
      %s163 = sphi 0, %s160
      %s164 = sphi 0, %s163
      %s180 = sphi 0, %s164
      %s188 = sphi 0, %s190
      %s191 = sphi 0, %s188
      %s192 = sphi 0, %s191
      %s208 = sphi 0, %s192
      %s216 = sphi 0, %s218
      %s219 = sphi 0, %s216
      %s220 = sphi 0, %s219
      %s236 = sphi 0, %s220
    $region4: #{tpu_custom_call.1} parent=1 // loop_header_branch
      %22 = sbr.rel (%p20) target = $region8
    $region5: #{tpu_custom_call.1} parent=1 // loop_body
      %s24 = ssub.s32 %s19, 1
      %s25 = ssub.s32 %s19, 2
      %s35 = sadd.s32 1, %s28
      %p36 = scmp.ge.s32.totalorder %s35, 3
      %s37 = scalar_select %p36, 0, %s35
      %s38 = sadd.s32 1, %s27
      %s39 = scalar_select %p36, %s38, %s27
      %p40 = scmp.ge.s32.totalorder %s39, 1
      %s41 = scalar_select %p40, 0, %s39
      %s42 = sadd.s32 1, %s26
      %s43 = scalar_select %p40, %s42, %s26
      %p44 = scmp.ge.s32.totalorder %s43, 2
      %s45 = scalar_select %p44, 0, %s43
      %s46 = ssub.s32 %s26, %s45
      %s47 = ssub.s32 %s27, %s41
      %s48 = sor.u32 %s46, %s47
      %p49 = scmp.eq.s32.totalorder %s48, 0
      %s51 = sadd.s32 %s50, 1
      %s52 = scalar_select %p49, %s50, %s51
      %p55 = pneg %p49
      %p56 = scmp.eq.s32.totalorder %s19, 5
      %p57 = por %p55, %p56
      %p58 = scmp.ne.s32.totalorder %s50, %s53
      %p59 = scmp.eq.s32.totalorder %s19, 0
      %p60 = por %p58, %p59
      %p61 = scmp.ne.s32.totalorder %s50, %s53
      %p62 = scmp.eq.s32.totalorder %s24, 5
      %p63 = por %p61, %p62
      %p64 = scmp.ne.s32.totalorder %s53, %s54
      %p65 = scmp.eq.s32.totalorder %s24, 0
      %p66 = por %p64, %p65
      %p67 = scmp.ne.s32.totalorder %s53, %s54
      %p68 = scmp.eq.s32.totalorder %s25, 5
      %p69 = por %p67, %p68
      %p71 = scmp.ne.s32.totalorder %s54, %s70
      %p72 = scmp.eq.s32.totalorder %s25, 0
      %p73 = por %p71, %p72
      %s74 = ssub.s32 %s26, %s45
      %p75 = scmp.eq.s32.totalorder %s74, 0
      %s77 = sadd.s32 %s76, 1
      %s78 = scalar_select %p75, %s76, %s77
      %p81 = pneg %p75
      %p82 = scmp.eq.s32.totalorder %s19, 5
      %p83 = por %p81, %p82
      %p84 = scmp.ne.s32.totalorder %s76, %s79
      %p85 = scmp.eq.s32.totalorder %s19, 0
      %p86 = por %p84, %p85
      %p87 = scmp.ne.s32.totalorder %s76, %s79
      %p88 = scmp.eq.s32.totalorder %s24, 5
      %p89 = por %p87, %p88
      %p90 = scmp.ne.s32.totalorder %s79, %s80
      %p91 = scmp.eq.s32.totalorder %s24, 0
      %p92 = por %p90, %p91
      %p93 = scmp.ne.s32.totalorder %s79, %s80
      %p94 = scmp.eq.s32.totalorder %s25, 5
      %p95 = por %p93, %p94
      %p97 = scmp.ne.s32.totalorder %s80, %s96
      %p98 = scmp.eq.s32.totalorder %s25, 0
      %p99 = por %p97, %p98
      %s100 = ssub.s32 %s26, %s45
      %s101 = ssub.s32 %s27, %s41
      %s102 = sor.u32 %s100, %s101
      %s103 = ssub.s32 %s28, %s37
      %s104 = sor.u32 %s102, %s103
      %p105 = scmp.eq.s32.totalorder %s104, 0
      %s107 = sadd.s32 %s106, 1
      %s108 = scalar_select %p105, %s106, %s107
      %p111 = pneg %p105
      %p112 = scmp.eq.s32.totalorder %s19, 5
      %p113 = por %p111, %p112
      %p114 = scmp.ne.s32.totalorder %s106, %s109
      %p115 = scmp.eq.s32.totalorder %s19, 0
      %p116 = por %p114, %p115
      %p117 = scmp.ne.s32.totalorder %s106, %s109
      %p118 = scmp.eq.s32.totalorder %s24, 5
      %p119 = por %p117, %p118
      %p120 = scmp.ne.s32.totalorder %s109, %s110
      %p121 = scmp.eq.s32.totalorder %s24, 0
      %p122 = por %p120, %p121
      %p123 = scmp.ne.s32.totalorder %s109, %s110
      %p124 = scmp.eq.s32.totalorder %s25, 5
      %p125 = por %p123, %p124
      %p127 = scmp.ne.s32.totalorder %s110, %s126
      %p128 = scmp.eq.s32.totalorder %s25, 0
      %p129 = por %p127, %p128
      %s130 = ssub.s32 %s26, %s45
      %s131 = ssub.s32 %s28, %s37
      %s132 = sor.u32 %s130, %s131
      %p133 = scmp.eq.s32.totalorder %s132, 0
      %s135 = sadd.s32 %s134, 1
      %s136 = scalar_select %p133, %s134, %s135
      %p139 = pneg %p133
      %p140 = scmp.eq.s32.totalorder %s19, 5
      %p141 = por %p139, %p140
      %p142 = scmp.ne.s32.totalorder %s134, %s137
      %p143 = scmp.eq.s32.totalorder %s19, 0
      %p144 = por %p142, %p143
      %p145 = scmp.ne.s32.totalorder %s134, %s137
      %p146 = scmp.eq.s32.totalorder %s24, 5
      %p147 = por %p145, %p146
      %p148 = scmp.ne.s32.totalorder %s137, %s138
      %p149 = scmp.eq.s32.totalorder %s24, 0
      %p150 = por %p148, %p149
      %p151 = scmp.ne.s32.totalorder %s137, %s138
      %p152 = scmp.eq.s32.totalorder %s25, 5
      %p153 = por %p151, %p152
      %p155 = scmp.ne.s32.totalorder %s138, %s154
      %p156 = scmp.eq.s32.totalorder %s25, 0
      %p157 = por %p155, %p156
      %s158 = ssub.s32 %s26, %s45
      %p159 = scmp.eq.s32.totalorder %s158, 0
      %s161 = sadd.s32 %s160, 1
      %s162 = scalar_select %p159, %s160, %s161
      %p165 = pneg %p159
      %p166 = scmp.eq.s32.totalorder %s19, 5
      %p167 = por %p165, %p166
      %p168 = scmp.ne.s32.totalorder %s160, %s163
      %p169 = scmp.eq.s32.totalorder %s19, 0
      %p170 = por %p168, %p169
      %p171 = scmp.ne.s32.totalorder %s160, %s163
      %p172 = scmp.eq.s32.totalorder %s24, 5
      %p173 = por %p171, %p172
      %p174 = scmp.ne.s32.totalorder %s163, %s164
      %p175 = scmp.eq.s32.totalorder %s24, 0
      %p176 = por %p174, %p175
      %p177 = scmp.ne.s32.totalorder %s163, %s164
      %p178 = scmp.eq.s32.totalorder %s25, 5
      %p179 = por %p177, %p178
      %p181 = scmp.ne.s32.totalorder %s164, %s180
      %p182 = scmp.eq.s32.totalorder %s25, 0
      %p183 = por %p181, %p182
      %s184 = ssub.s32 %s26, %s45
      %s185 = ssub.s32 %s27, %s41
      %s186 = sor.u32 %s184, %s185
      %p187 = scmp.eq.s32.totalorder %s186, 0
      %s189 = sadd.s32 %s188, 1
      %s190 = scalar_select %p187, %s188, %s189
      %p193 = pneg %p187
      %p194 = scmp.eq.s32.totalorder %s19, 5
      %p195 = por %p193, %p194
      %p196 = scmp.ne.s32.totalorder %s188, %s191
      %p197 = scmp.eq.s32.totalorder %s19, 0
      %p198 = por %p196, %p197
      %p199 = scmp.ne.s32.totalorder %s188, %s191
      %p200 = scmp.eq.s32.totalorder %s24, 5
      %p201 = por %p199, %p200
      %p202 = scmp.ne.s32.totalorder %s191, %s192
      %p203 = scmp.eq.s32.totalorder %s24, 0
      %p204 = por %p202, %p203
      %p205 = scmp.ne.s32.totalorder %s191, %s192
      %p206 = scmp.eq.s32.totalorder %s25, 5
      %p207 = por %p205, %p206
      %p209 = scmp.ne.s32.totalorder %s192, %s208
      %p210 = scmp.eq.s32.totalorder %s25, 0
      %p211 = por %p209, %p210
      %s212 = ssub.s32 %s26, %s45
      %s213 = ssub.s32 %s27, %s41
      %s214 = sor.u32 %s212, %s213
      %p215 = scmp.eq.s32.totalorder %s214, 0
      %s217 = sadd.s32 %s216, 1
      %s218 = scalar_select %p215, %s216, %s217
      %p221 = pneg %p215
      %p222 = scmp.eq.s32.totalorder %s19, 5
      %p223 = por %p221, %p222
      %p224 = scmp.ne.s32.totalorder %s216, %s219
      %p225 = scmp.eq.s32.totalorder %s19, 0
      %p226 = por %p224, %p225
      %p227 = scmp.ne.s32.totalorder %s216, %s219
      %p228 = scmp.eq.s32.totalorder %s24, 5
      %p229 = por %p227, %p228
      %p230 = scmp.ne.s32.totalorder %s219, %s220
      %p231 = scmp.eq.s32.totalorder %s24, 0
      %p232 = por %p230, %p231
      %p233 = scmp.ne.s32.totalorder %s219, %s220
      %p234 = scmp.eq.s32.totalorder %s25, 5
      %p235 = por %p233, %p234
      %p237 = scmp.ne.s32.totalorder %s220, %s236
      %p238 = scmp.eq.s32.totalorder %s25, 0
      %p239 = por %p237, %p238
      %p240 = scmp.le.s32.totalorder 1, %s19
      %p241 = scmp.lt.s32.totalorder %s19, 7
      %p242 = pnand %p240, %p241
      %p243 = pneg %p242
      // Predicated region
      $region9: #{tpu_custom_call.1} parent=5 // pred_check
        _
      $region10: #{tpu_custom_call.1} parent=5 // pred_check_branch
        %245 = sbr.rel (%p242) target = $region12
      $region11: #{tpu_custom_call.1} parent=5 // pred_region
        %s246 = ssub.s32 %s19, 1
      $region12: #{tpu_custom_call.1} parent=5 // pred_fallthru
        _
      %p247 = scmp.lt.s32.totalorder %s19, 6
      // Predicated region
      $region13: #{tpu_custom_call.1} parent=5 // pred_check
        %p248 = pneg %p247
      $region14: #{tpu_custom_call.1} parent=5 // pred_check_branch
        %250 = sbr.rel (%p248) target = $region16
      $region15: #{tpu_custom_call.1} parent=5 // pred_region
        // Predicated region
        $region17: #{tpu_custom_call.1} parent=15 // pred_check
          %p251 = pneg %p60
        $region18: #{tpu_custom_call.1} parent=15 // pred_check_branch
          %253 = sbr.rel (%p251) target = $region20
        $region19: #{tpu_custom_call.1} parent=15 // pred_region
          %s254 = smul.u32 2, %s27
          %p255 = scmp.lt.s32.totalorder %s26, 1
          %s256 = scalar_select %p255, %s26, 1
          %p257 = scmp.lt.s32.totalorder %s254, 1
          %s258 = scalar_select %p257, %s254, 1
          %s259 = smul.addr %s256, 2
          %s260 = sadd.s32 %s258, %s259
          %s261 = smul.addr %s260, 8
          %s262 = scalar_lea.vmem %s0, %s261
          %s263 = smul.u32 2, %s27
        $region20: #{tpu_custom_call.1} parent=15 // pred_fallthru
          _
        // Predicated region
        $region21: #{tpu_custom_call.1} parent=15 // pred_check
          %p264 = pneg %p86
        $region22: #{tpu_custom_call.1} parent=15 // pred_check_branch
          %266 = sbr.rel (%p264) target = $region24
        $region23: #{tpu_custom_call.1} parent=15 // pred_region
          %p267 = scmp.lt.s32.totalorder %s26, 1
          %s268 = scalar_select %p267, %s26, 1
          %s269 = smul.addr %s268, 8
          %s270 = scalar_lea.vmem %s1, %s269
        $region24: #{tpu_custom_call.1} parent=15 // pred_fallthru
          _
        // Predicated region
        $region25: #{tpu_custom_call.1} parent=15 // pred_check
          %p271 = pneg %p116
        $region26: #{tpu_custom_call.1} parent=15 // pred_check_branch
          %273 = sbr.rel (%p271) target = $region28
        $region27: #{tpu_custom_call.1} parent=15 // pred_region
          %s274 = sand.u32 %s106, 1
          %s275 = sand.u32 %s106, 1
          %s276 = smul.addr %s275, 8
          %s277 = scalar_lea.vmem [#allocation6], %s276
          %s278 = smul.u32 2, %s27
          %s279 = smul.addr %s278, 3
          %s280 = sadd.s32 %s28, %s279
          %s281 = smul.addr %s26, 6
          %s282 = sadd.s32 %s280, %s281
          %s283 = smul.addr %s282, 4
          %s284 = scalar_lea.vmem %s2, %s283
          // Predicated region
          $region29: #{tpu_custom_call.1} parent=27 // pred_check
            _
          $region30: #{tpu_custom_call.1} parent=27 // pred_check_branch
            %286 = sbr.rel (0) target = $region32
          $region31: #{tpu_custom_call.1} parent=27 // pred_region
            // Predicated region
            $region33: #{tpu_custom_call.1} parent=31 // pred_check
              _
            $region34: #{tpu_custom_call.1} parent=31 // pred_check_branch
              %288 = sbr.rel target = $region36
            $region35: #{tpu_custom_call.1} parent=31 // pred_region
              // Predicated region
              $region48: #{tpu_custom_call.1} parent=35 // pred_check
                _
              $region49: #{tpu_custom_call.1} parent=35 // pred_check_branch
                %306 = sbr.rel (0) target = $region51
              $region50: #{tpu_custom_call.1} parent=35 // pred_region
                loop: start=0, step=1, limit=1
                $region52: #{tpu_custom_call.1} parent=50 // loop_pre_header
                  _
                $region53: #{tpu_custom_call.1} parent=50 // loop_header
                  %s308 = sphi 0, %s312
                  %p309 = scmp.ge.s32.totalorder %s308, 1
                  %s313 = sphi %s284, %s284
                  %s314 = sphi %s277, %s277
                $region54: #{tpu_custom_call.1} parent=50 // loop_header_branch
                  %311 = sbr.rel (%p309) target = $region58
                $region55: #{tpu_custom_call.1} parent=50 // loop_body
                  _
                $region56: #{tpu_custom_call.1} parent=50 // loop_footer
                  %s312 = sadd.s32 1, %s308
                $region57: #{tpu_custom_call.1} parent=50 // loop_footer_branch
                  %307 = sbr.rel target = $region53
                $region58: #{tpu_custom_call.1} parent=50 // loop_exit
                  _
                %s316 = ssub.s32 16, 1
                loop: start=0, step=1, limit=1
                $region59: #{tpu_custom_call.1} parent=50 // loop_pre_header
                  _
                $region60: #{tpu_custom_call.1} parent=50 // loop_header
                  %s318 = sphi 0, %s322
                  %p319 = scmp.ge.s32.totalorder %s318, 1
                  %s323 = sphi %s284, %s284
                  %s324 = sphi %s277, %s277
                $region61: #{tpu_custom_call.1} parent=50 // loop_header_branch
                  %321 = sbr.rel (%p319) target = $region65
                $region62: #{tpu_custom_call.1} parent=50 // loop_body
                  %v325 = vld [vmem:[%s323] sm:%s316]
                  %326 = vst [vmem:[%s324] sm:%s316] %v325
                  %v327 = vld [vmem:[%s323 + $0xc] sm:%s316]
                  %328 = vst [vmem:[%s324 + $0x4] sm:%s316] %v327
                $region63: #{tpu_custom_call.1} parent=50 // loop_footer
                  %s322 = sadd.s32 1, %s318
                $region64: #{tpu_custom_call.1} parent=50 // loop_footer_branch
                  %317 = sbr.rel target = $region60
                $region65: #{tpu_custom_call.1} parent=50 // loop_exit
                  _
              $region51: #{tpu_custom_call.1} parent=35 // pred_fallthru
                _
            $region36: #{tpu_custom_call.1} parent=31 // pred_fallthru
              _
            // Predicated region
            $region37: #{tpu_custom_call.1} parent=31 // pred_check
              _
            $region38: #{tpu_custom_call.1} parent=31 // pred_check_branch
              %290 = sbr.rel (0) target = $region40
            $region39: #{tpu_custom_call.1} parent=31 // pred_region
              %s292 = ssub.s32 16, 1
              loop: start=0, step=1, limit=1
              $region41: #{tpu_custom_call.1} parent=39 // loop_pre_header
                _
              $region42: #{tpu_custom_call.1} parent=39 // loop_header
                %s294 = sphi 0, %s298
                %p295 = scmp.ge.s32.totalorder %s294, 1
                %s299 = sphi %s284, %s284
                %s300 = sphi %s277, %s277
              $region43: #{tpu_custom_call.1} parent=39 // loop_header_branch
                %297 = sbr.rel (%p295) target = $region47
              $region44: #{tpu_custom_call.1} parent=39 // loop_body
                %v301 = vld [vmem:[%s299] sm:%s292]
                %302 = vst [vmem:[%s300] sm:%s292] %v301
                %v303 = vld [vmem:[%s299 + $0xc] sm:%s292]
                %304 = vst [vmem:[%s300 + $0x4] sm:%s292] %v303
              $region45: #{tpu_custom_call.1} parent=39 // loop_footer
                %s298 = sadd.s32 1, %s294
              $region46: #{tpu_custom_call.1} parent=39 // loop_footer_branch
                %293 = sbr.rel target = $region42
              $region47: #{tpu_custom_call.1} parent=39 // loop_exit
                _
            $region40: #{tpu_custom_call.1} parent=31 // pred_fallthru
              _
          $region32: #{tpu_custom_call.1} parent=27 // pred_fallthru
            _
          %329 = vnop
        $region28: #{tpu_custom_call.1} parent=15 // pred_fallthru
          _
        // Predicated region
        $region66: #{tpu_custom_call.1} parent=15 // pred_check
          %p330 = pneg %p144
        $region67: #{tpu_custom_call.1} parent=15 // pred_check_branch
          %332 = sbr.rel (%p330) target = $region69
        $region68: #{tpu_custom_call.1} parent=15 // pred_region
          %s333 = sand.u32 %s134, 1
          %s334 = scalar_lea.sflag [#allocation8], %s333
          %s335 = sand.u32 %s134, 1
          %s336 = smul.addr %s335, 64
          %s337 = scalar_lea.vmem [#allocation7], %s336
          %s338 = smul.u32 16, %s28
          %340 = vsyncadd %s334, 0
          %s341 = smul.addr %s26, 48
          %s342 = sadd.s32 %s338, %s341
          %s343 = smul.addr %s342, 4
          %s344 = scalar_lea.hbm %s3, %s343
          %s345 = sshll.u32 %s344, 4
          %s346 = int_to_ptr.hbm [resolvable:$true] %s345
          %s347 = sshll.u32 %s337, 4
          %s348 = int_to_ptr.vmem [resolvable:$true] %s347
          %353 = dma.hbm_to_vmem [thread:$0]  %s346, 1024, %s348, %s334, 64, 64, 4
        $region69: #{tpu_custom_call.1} parent=15 // pred_fallthru
          _
        // Predicated region
        $region70: #{tpu_custom_call.1} parent=15 // pred_check
          %p354 = pneg %p170
        $region71: #{tpu_custom_call.1} parent=15 // pred_check_branch
          %356 = sbr.rel (%p354) target = $region73
        $region72: #{tpu_custom_call.1} parent=15 // pred_region
          %p357 = scmp.lt.s32.totalorder %s26, 1
          %s358 = scalar_select %p357, %s26, 1
          %s359 = scalar_lea.vmem %s4, %s358
        $region73: #{tpu_custom_call.1} parent=15 // pred_fallthru
          _
      $region16: #{tpu_custom_call.1} parent=5 // pred_fallthru
        _
      %p360 = scmp.le.s32.totalorder 1, %s19
      %p361 = scmp.lt.s32.totalorder %s19, 7
      %p362 = pnand %p360, %p361
      %p363 = pneg %p362
      // Predicated region
      $region74: #{tpu_custom_call.1} parent=5 // pred_check
        _
      $region75: #{tpu_custom_call.1} parent=5 // pred_check_branch
        %365 = sbr.rel (%p362) target = $region77
      $region76: #{tpu_custom_call.1} parent=5 // pred_region
        %s366 = ssub.s32 %s19, 1
        %s367 = sand.u32 %s109, 1
        %s368 = sand.u32 %s109, 1
        %s369 = smul.addr %s368, 8
        %s370 = scalar_lea.vmem [#allocation6], %s369
        // Predicated region
        $region78: #{tpu_custom_call.1} parent=76 // pred_check
          %p371 = pneg %p122
        $region79: #{tpu_custom_call.1} parent=76 // pred_check_branch
          %373 = sbr.rel (%p371) target = $region81
        $region80: #{tpu_custom_call.1} parent=76 // pred_region
          _
        $region81: #{tpu_custom_call.1} parent=76 // pred_fallthru
          _
        %s374 = sand.u32 %s137, 1
        %s375 = scalar_lea.sflag [#allocation8], %s374
        %s376 = sand.u32 %s137, 1
        %s377 = smul.addr %s376, 64
        %s378 = scalar_lea.vmem [#allocation7], %s377
        // Predicated region
        $region82: #{tpu_custom_call.1} parent=76 // pred_check
          %p379 = pneg %p150
        $region83: #{tpu_custom_call.1} parent=76 // pred_check_branch
          %381 = sbr.rel (%p379) target = $region85
        $region84: #{tpu_custom_call.1} parent=76 // pred_region
          %383 = dma.done %s375, 1024
        $region85: #{tpu_custom_call.1} parent=76 // pred_fallthru
          _
        %s384 = smul.u32 2, %s30
        %p385 = scmp.lt.s32.totalorder %s29, 1
        %s386 = scalar_select %p385, %s29, 1
        %p387 = scmp.lt.s32.totalorder %s384, 1
        %s388 = scalar_select %p387, %s384, 1
        %s389 = smul.addr %s386, 2
        %s390 = sadd.s32 %s388, %s389
        %s391 = smul.addr %s390, 8
        %s392 = scalar_lea.vmem %s0, %s391
        %p393 = pneg %p66
        %p394 = pneg %p63
        %p395 = scmp.lt.s32.totalorder %s29, 1
        %s396 = scalar_select %p395, %s29, 1
        %s397 = smul.addr %s396, 8
        %s398 = scalar_lea.vmem %s1, %s397
        %p399 = pneg %p92
        %p400 = pneg %p89
        %s401 = sand.u32 %s109, 1
        %s402 = sand.u32 %s109, 1
        %s403 = smul.addr %s402, 8
        %s404 = scalar_lea.vmem [#allocation6], %s403
        %p405 = pneg %p122
        %p406 = pneg %p119
        %s407 = sand.u32 %s137, 1
        %s408 = scalar_lea.sflag [#allocation8], %s407
        %s409 = sand.u32 %s137, 1
        %s410 = smul.addr %s409, 64
        %s411 = scalar_lea.vmem [#allocation7], %s410
        %p412 = pneg %p150
        %p413 = pneg %p147
        %p414 = scmp.lt.s32.totalorder %s29, 1
        %s415 = scalar_select %p414, %s29, 1
        %s416 = scalar_lea.vmem %s4, %s415
        %p417 = pneg %p176
        %p418 = pneg %p173
        %p419 = pneg %p204
        %p420 = pneg %p201
        %s421 = sand.u32 %s191, 1
        %s422 = scalar_lea.sflag [#allocation9], %s421
        %s423 = sand.u32 %s191, 1
        %s424 = smul.addr %s423, 16
        %s425 = scalar_lea.vmem [#allocation10], %s424
        %p426 = pneg %p232
        %p427 = pneg %p229
        %s428 = smul.u32 2, %s30
        %p429 = scmp.lt.s32.totalorder %s29, 1
        %s430 = scalar_select %p429, %s29, 1
        %p431 = scmp.lt.s32.totalorder %s428, 1
        %s432 = scalar_select %p431, %s428, 1
        %s433 = smul.addr %s430, 2
        %s434 = sadd.s32 %s432, %s433
        %s435 = smul.addr %s434, 8
        %s436 = scalar_lea.vmem %s6, %s435
        %s437 = smul.u32 2, %s30
        %p438 = scmp.lt.s32.totalorder %s29, 1
        %s439 = scalar_select %p438, %s29, 1
        %p440 = scmp.lt.s32.totalorder %s437, 1
        %s441 = scalar_select %p440, %s437, 1
        %s442 = smul.addr %s439, 2
        %s443 = sadd.s32 %s441, %s442
        %s444 = smul.addr %s443, 8
        %s445 = scalar_lea.vmem %s0, %s444
        %s446 = smul.u32 2, %s30
        %p447 = scmp.lt.s32.totalorder %s29, 1
        %s448 = scalar_select %p447, %s29, 1
        %s449 = smul.addr %s448, 8
        %s450 = scalar_lea.vmem %s1, %s449
        %s451 = smul.u32 2, %s30
        %s452 = smul.u32 16, %s31
        %p453 = scmp.lt.s32.totalorder %s29, 1
        %s454 = scalar_select %p453, %s29, 1
        %s455 = scalar_lea.vmem %s4, %s454
        %s456 = smul.u32 2, %s30
        %s457 = smul.u32 2, %s30
        %p458 = scmp.lt.s32.totalorder %s29, 1
        %s459 = scalar_select %p458, %s29, 1
        %p460 = scmp.lt.s32.totalorder %s457, 1
        %s461 = scalar_select %p460, %s457, 1
        %s462 = smul.addr %s459, 2
        %s463 = sadd.s32 %s461, %s462
        %s464 = smul.addr %s463, 8
        %s465 = scalar_lea.vmem %s6, %s464
        %s466 = smul.u32 2, %s30
        %p467 = scmp.eq.s32.totalorder %s31, 0
        // Predicated region
        $region86: #{tpu_custom_call.1} parent=76 // pred_check
          %p468 = pneg %p467
        $region87: #{tpu_custom_call.1} parent=76 // pred_check_branch
          %470 = sbr.rel (%p468) target = $region89
        $region88: #{tpu_custom_call.1} parent=76 // pred_region
          %471 = vst [vmem:[#allocation2] sm:$0xff] 0.0
          %472 = vst [vmem:[#allocation2 + $0x8] sm:$0xff] 0.0
          %473 = vst [vmem:[#allocation2 + $0x10] sm:$0xff] 0.0
          %474 = vst [vmem:[#allocation2 + $0x18] sm:$0xff] 0.0
          %vm475 = vcmask 7168
          %476 = vst.msk [vmem:[#allocation3] sm:$0xff] %vm475, 0.0
          %477 = vst.msk [vmem:[#allocation3 + $0x8] sm:$0xff] %vm475, 0.0
          %478 = vst.msk [vmem:[#allocation4] sm:$0xff] %vm475, 0.0
          %479 = vst.msk [vmem:[#allocation4 + $0x8] sm:$0xff] %vm475, 0.0
          %480 = vst [vmem:[#allocation5] sm:$0x1] 0.0
        $region89: #{tpu_custom_call.1} parent=76 // pred_fallthru
          _
        %v481 = vld [vmem:[%s370] sm:$0xf]
        %v482 = vld [vmem:[%s370 + $0x4] sm:$0xf]
        %v483 = vunpack.c.l.bf16 %v481
        %v484 = vunpack.c.l.bf16 %v482
        %v485 = vld [vmem:[%s378] sm:$0xf]
        %v486 = vld [vmem:[%s378 + $0x4] sm:$0xf]
        %v487 = vld [vmem:[%s378 + $0x8] sm:$0xf]
        %v488 = vld [vmem:[%s378 + $0xc] sm:$0xf]
        %v489 = vld [vmem:[%s378 + $0x10] sm:$0xf]
        %v490 = vld [vmem:[%s378 + $0x14] sm:$0xf]
        %v491 = vld [vmem:[%s378 + $0x18] sm:$0xf]
        %v492 = vld [vmem:[%s378 + $0x1c] sm:$0xf]
        %v493 = vld [vmem:[%s378 + $0x20] sm:$0xf]
        %v494 = vld [vmem:[%s378 + $0x24] sm:$0xf]
        %v495 = vld [vmem:[%s378 + $0x28] sm:$0xf]
        %v496 = vld [vmem:[%s378 + $0x2c] sm:$0xf]
        %v497 = vld [vmem:[%s378 + $0x30] sm:$0xf]
        %v498 = vld [vmem:[%s378 + $0x34] sm:$0xf]
        %v499 = vld [vmem:[%s378 + $0x38] sm:$0xf]
        %v500 = vld [vmem:[%s378 + $0x3c] sm:$0xf]
        %v501 = vmax.f32 %v483, 0.0
        %v502 = vmax.f32 %v484, 0.0
        %v503 = vand.u32 2147483647, %v483
        %v504 = vand.u32 2147483647, %v484
        %v505 = vsub.f32 0.0, %v503
        %v506 = vsub.f32 0.0, %v504
        %v507 = vmul.f32 %v505, 1.442695
        %v508 = vpow.pop %v507
        %v509 = vmul.f32 %v506, 1.442695
        %v510 = vpow.pop %v509
        %v511 = vadd.f32 %v508, 1.0
        %v512 = vadd.f32 %v510, 1.0
        %v513 = vlog2.pop %v511
        %v514 = vmul.f32 %v513, 0.6931472
        %v515 = vlog2.pop %v512
        %v516 = vmul.f32 %v515, 0.6931472
        %v517 = vadd.f32 %v501, %v514
        %v518 = vadd.f32 %v502, %v516
        %v519 = vsub.f32 0.0, %v483
        %v520 = vsub.f32 0.0, %v484
        %v521 = vmul.f32 %v519, 1.442695
        %v522 = vpow.pop %v521
        %v523 = vmul.f32 %v520, 1.442695
        %v524 = vpow.pop %v523
        %v525 = vadd.f32 %v522, 1.0
        %v526 = vadd.f32 %v524, 1.0
        %v527 = vrcp.pop %v525
        %v528 = vrcp.pop %v526
        %v529 = vpack.c.bf16 %v520, %v519
        %v530 = vpack.c.bf16 %v528, %v527
        %v531 = vld [vmem:[#allocation2] sm:$0xff]
        %v532 = vld [vmem:[#allocation2 + $0x8] sm:$0xff]
        %v533 = vld [vmem:[#allocation2 + $0x10] sm:$0xff]
        %v534 = vld [vmem:[#allocation2 + $0x18] sm:$0xff]
        %v551 = vunpack.c.l.b16 %v485
        %v552 = vunpack.c.l.b16 %v486
        %v553 = vunpack.c.l.b16 %v487
        %v554 = vunpack.c.l.b16 %v488
        %v555 = vunpack.c.l.b16 %v489
        %v556 = vunpack.c.l.b16 %v490
        %v557 = vunpack.c.l.b16 %v491
        %v558 = vunpack.c.l.b16 %v492
        %v559 = vunpack.c.l.b16 %v493
        %v560 = vunpack.c.l.b16 %v494
        %v561 = vunpack.c.l.b16 %v495
        %v562 = vunpack.c.l.b16 %v496
        %v563 = vunpack.c.l.b16 %v497
        %v564 = vunpack.c.l.b16 %v498
        %v565 = vunpack.c.l.b16 %v499
        %v566 = vunpack.c.l.b16 %v500
        %v567 = vpack.c.b16 %v552, %v551
        %v568 = vpack.c.b16 %v554, %v553
        %v569 = vpack.c.b16 %v556, %v555
        %v570 = vpack.c.b16 %v558, %v557
        %v571 = vpack.c.b16 %v560, %v559
        %v572 = vpack.c.b16 %v562, %v561
        %v573 = vpack.c.b16 %v564, %v563
        %v574 = vpack.c.b16 %v566, %v565
        %583 = vmatpush.bf16.msra.mxu0 %v574
        %584 = vmatpush.bf16.msra.mxu0 %v573
        %585 = vmatpush.bf16.msra.mxu0 %v572
        %586 = vmatpush.bf16.msra.mxu0 %v571
        %587 = vmatpush.bf16.msra.mxu0 %v570
        %588 = vmatpush.bf16.msra.mxu0 %v569
        %589 = vmatpush.bf16.msra.mxu0 %v568
        %590 = vmatpush.bf16.msra.mxu0 %v567
        %591 = vmatmul.bf16.gmra.mxu0 %v529
        %v592 = vpop.f32.mrf.mxu0
        %v593 = vadd.f32 0.0, %v592
        %v594 = vpop.f32.mrf.mxu0
        %v595 = vadd.f32 0.0, %v594
        %596 = vmatmul.bf16.gmra.mxu0 %v530
        %v597 = vpop.f32.mrf.mxu0
        %v598 = vadd.f32 0.0, %v597
        %v599 = vpop.f32.mrf.mxu0
        %v600 = vadd.f32 0.0, %v599
        %601 = vdwg.mxu0
        %v602 = vadd.f32 %v531, %v593
        %v603 = vadd.f32 %v532, %v595
        %v604 = vadd.f32 %v533, %v598
        %v605 = vadd.f32 %v534, %v600
        %606 = vst [vmem:[#allocation2] sm:$0xff] %v602
        %607 = vst [vmem:[#allocation2 + $0x8] sm:$0xff] %v603
        %608 = vst [vmem:[#allocation2 + $0x10] sm:$0xff] %v604
        %609 = vst [vmem:[#allocation2 + $0x18] sm:$0xff] %v605
        %v610 = vld [vmem:[#allocation3] sm:$0xff]
        %v611 = vld [vmem:[#allocation3 + $0x8] sm:$0xff]
        %612 = vadd.xlane.f32.xlu0 %v517
        %v613 = vpop.xlane.xlu0 %612
        %614 = vadd.xlane.f32.xlu0 %v518
        %v615 = vpop.xlane.xlu0 %614
        %v616 = vadd.f32 %v610, %v613
        %v617 = vadd.f32 %v611, %v615
        %vm618 = vcmask 7168
        %619 = vst.msk [vmem:[#allocation3] sm:$0xff] %vm618, %v616
        %620 = vst.msk [vmem:[#allocation3 + $0x8] sm:$0xff] %vm618, %v617
        %v621 = vld [vmem:[#allocation4] sm:$0xff]
        %v622 = vld [vmem:[#allocation4 + $0x8] sm:$0xff]
        %623 = vadd.xlane.f32.xlu0 %v527
        %v624 = vpop.xlane.xlu0 %623
        %625 = vadd.xlane.f32.xlu0 %v528
        %v626 = vpop.xlane.xlu0 %625
        %v627 = vadd.f32 %v621, %v624
        %v628 = vadd.f32 %v622, %v626
        %629 = vst.msk [vmem:[#allocation4] sm:$0xff] %vm618, %v627
        %630 = vst.msk [vmem:[#allocation4 + $0x8] sm:$0xff] %vm618, %v628
        %v631 = vld [vmem:[#allocation5] sm:$0x1]
        %v632 = vunpack.c.l.bf16 %v485
        %v633 = vunpack.c.l.bf16 %v486
        %v634 = vunpack.c.l.bf16 %v487
        %v635 = vunpack.c.l.bf16 %v488
        %v636 = vunpack.c.l.bf16 %v489
        %v637 = vunpack.c.l.bf16 %v490
        %v638 = vunpack.c.l.bf16 %v491
        %v639 = vunpack.c.l.bf16 %v492
        %v640 = vunpack.c.l.bf16 %v493
        %v641 = vunpack.c.l.bf16 %v494
        %v642 = vunpack.c.l.bf16 %v495
        %v643 = vunpack.c.l.bf16 %v496
        %v644 = vunpack.c.l.bf16 %v497
        %v645 = vunpack.c.l.bf16 %v498
        %v646 = vunpack.c.l.bf16 %v499
        %v647 = vunpack.c.l.bf16 %v500
        %v648 = vadd.f32 %v632, %v633
        %v649 = vadd.f32 %v648, %v634
        %v650 = vadd.f32 %v649, %v635
        %v651 = vadd.f32 %v650, %v636
        %v652 = vadd.f32 %v651, %v637
        %v653 = vadd.f32 %v652, %v638
        %v654 = vadd.f32 %v653, %v639
        %v655 = vadd.f32 %v654, %v640
        %v656 = vadd.f32 %v655, %v641
        %v657 = vadd.f32 %v656, %v642
        %v658 = vadd.f32 %v657, %v643
        %v659 = vadd.f32 %v658, %v644
        %v660 = vadd.f32 %v659, %v645
        %v661 = vadd.f32 %v660, %v646
        %v662 = vadd.f32 %v661, %v647
        %v663 = vrot.slane %v662, 4
        %v664 = vadd.f32 %v662, %v663
        %v665 = vrot.slane %v664, 2
        %v666 = vadd.f32 %v664, %v665
        %v667 = vrot.slane %v666, 1
        %v668 = vadd.f32 %v666, %v667
        %v669 = vadd.f32 %v631, %v668
        %670 = vst [vmem:[#allocation5] sm:$0x1] %v669
        %p671 = scmp.eq.s32.totalorder %s31, 2
        // Predicated region
        $region90: #{tpu_custom_call.1} parent=76 // pred_check
          %p672 = pneg %p671
        $region91: #{tpu_custom_call.1} parent=76 // pred_check_branch
          %674 = sbr.rel (%p672) target = $region93
        $region92: #{tpu_custom_call.1} parent=76 // pred_region
          %v675 = vld [vmem:[%s445] sm:$0xff]
          %v676 = vld [vmem:[%s445 + $0x8] sm:$0xff]
          %vm677 = vcmask 48128
          %v678 = vsel %vm677, %v675, -inf
          %679 = vmax.xlane.f32.xlu0 %v678
          %v680 = vpop.xlane.xlu0 %679
          %v681 = vsel %vm677, %v676, -inf
          %682 = vmax.xlane.f32.xlu0 %v681
          %v683 = vpop.xlane.xlu0 %682
          %v684 = vsub.f32 %v675, %v680
          %v685 = vsub.f32 %v676, %v683
          %v686 = vmul.f32 %v684, 1.442695
          %v687 = vpow.pop %v686
          %v688 = vmul.f32 %v685, 1.442695
          %v689 = vpow.pop %v688
          %v690 = vsel %vm677, %v687, 0.0
          %691 = vadd.xlane.f32.xlu0 %v690
          %v692 = vpop.xlane.xlu0 %691
          %v693 = vsel %vm677, %v689, 0.0
          %694 = vadd.xlane.f32.xlu0 %v693
          %v695 = vpop.xlane.xlu0 %694
          %v696 = vrcp.pop %v692
          %v697 = vrcp.pop %v695
          %v698 = vmul.f32 %v687, %v696
          %v699 = vmul.f32 %v689, %v697
          %v700 = vld [vmem:[%s450] sm:$0x3f]
          %702 = vset.pattern.permute.xlu0 0
          %703 = vperm.xlu0 %702, %v698
          %v704 = vpop.permute.xlu0 %703
          %707 = vset.pattern.permute.xlu0 0
          %708 = vperm.xlu0 %707, %v699
          %v709 = vpop.permute.xlu0 %708
          %v711 = vperm.slane %v700, 0
          %v712 = vmul.f32 %v704, %v711
          %v713 = vmul.f32 %v709, %v711
          %714 = vset.pattern.permute.xlu0 1
          %715 = vperm.xlu0 %714, %v698
          %v716 = vpop.permute.xlu0 %715
          %718 = vset.pattern.permute.xlu0 1
          %719 = vperm.xlu0 %718, %v699
          %v720 = vpop.permute.xlu0 %719
          %v722 = vperm.slane %v700, 1
          %v723 = vmul.f32 %v716, %v722
          %v724 = vmul.f32 %v720, %v722
          %v725 = vadd.f32 %v712, %v723
          %v726 = vadd.f32 %v713, %v724
          %727 = vset.pattern.permute.xlu0 2
          %728 = vperm.xlu0 %727, %v698
          %v729 = vpop.permute.xlu0 %728
          %731 = vset.pattern.permute.xlu0 2
          %732 = vperm.xlu0 %731, %v699
          %v733 = vpop.permute.xlu0 %732
          %v735 = vperm.slane %v700, 2
          %v736 = vmul.f32 %v729, %v735
          %v737 = vmul.f32 %v733, %v735
          %v738 = vadd.f32 %v725, %v736
          %v739 = vadd.f32 %v726, %v737
          %740 = vset.pattern.permute.xlu0 3
          %741 = vperm.xlu0 %740, %v698
          %v742 = vpop.permute.xlu0 %741
          %744 = vset.pattern.permute.xlu0 3
          %745 = vperm.xlu0 %744, %v699
          %v746 = vpop.permute.xlu0 %745
          %v748 = vperm.slane %v700, 3
          %v749 = vmul.f32 %v742, %v748
          %v750 = vmul.f32 %v746, %v748
          %v751 = vadd.f32 %v738, %v749
          %v752 = vadd.f32 %v739, %v750
          %753 = vset.pattern.permute.xlu0 4
          %754 = vperm.xlu0 %753, %v698
          %v755 = vpop.permute.xlu0 %754
          %757 = vset.pattern.permute.xlu0 4
          %758 = vperm.xlu0 %757, %v699
          %v759 = vpop.permute.xlu0 %758
          %v761 = vperm.slane %v700, 4
          %v762 = vmul.f32 %v755, %v761
          %v763 = vmul.f32 %v759, %v761
          %v764 = vadd.f32 %v751, %v762
          %v765 = vadd.f32 %v752, %v763
          %766 = vset.pattern.permute.xlu0 5
          %767 = vperm.xlu0 %766, %v698
          %v768 = vpop.permute.xlu0 %767
          %770 = vset.pattern.permute.xlu0 5
          %771 = vperm.xlu0 %770, %v699
          %v772 = vpop.permute.xlu0 %771
          %v774 = vperm.slane %v700, 5
          %v775 = vmul.f32 %v768, %v774
          %v776 = vmul.f32 %v772, %v774
          %v777 = vadd.f32 %v764, %v775
          %v778 = vadd.f32 %v765, %v776
          %v779 = vsub.f32 0.0, %v777
          %v780 = vsub.f32 0.0, %v778
          %v781 = vld [vmem:[#allocation2] sm:$0xff]
          %v782 = vld [vmem:[#allocation2 + $0x8] sm:$0xff]
          %v783 = vld [vmem:[#allocation2 + $0x10] sm:$0xff]
          %v784 = vld [vmem:[#allocation2 + $0x18] sm:$0xff]
          %v785 = vld [vmem:[#allocation3] sm:$0xff]
          %v786 = vld [vmem:[#allocation3 + $0x8] sm:$0xff]
          %788 = vset.pattern.permute.xlu0 0
          %789 = vperm.xlu0 %788, %v785
          %v790 = vpop.permute.xlu0 %789
          %793 = vset.pattern.permute.xlu0 0
          %794 = vperm.xlu0 %793, %v786
          %v795 = vpop.permute.xlu0 %794
          %v797 = vadd.f32 %v781, %v790
          %v798 = vadd.f32 %v782, %v795
          %v799 = vmul.f32 %v797, 0.0026041667
          %v800 = vmul.f32 %v798, 0.0026041667
          %v801 = vld [vmem:[#allocation4] sm:$0xff]
          %v802 = vld [vmem:[#allocation4 + $0x8] sm:$0xff]
          %v803 = vld [vmem:[#allocation5] sm:$0x1]
          %805 = vset.pattern.permute.xlu0 0
          %806 = vperm.xlu0 %805, %v801
          %v807 = vpop.permute.xlu0 %806
          %810 = vset.pattern.permute.xlu0 0
          %811 = vperm.xlu0 %810, %v802
          %v812 = vpop.permute.xlu0 %811
          %v815 = vperm.slane %v803, 0
          %v817 = vadd.f32 %v807, %v815
          %v818 = vadd.f32 %v812, %v815
          %v819 = vmul.f32 %v783, 2.0
          %v820 = vmul.f32 %v784, 2.0
          %v821 = vadd.f32 %v819, 1.0
          %v822 = vadd.f32 %v820, 1.0
          %v823 = vadd.f32 %v817, 1.0
          %v824 = vadd.f32 %v818, 1.0
          %v825 = vrcp.pop %v823
          %v826 = vrcp.pop %v824
          %v827 = vmul.f32 %v821, %v825
          %v828 = vmul.f32 %v822, %v826
          %v829 = vsub.f32 1.0, %v827
          %v830 = vsub.f32 1.0, %v828
          %v831 = vadd.f32 %v799, %v779
          %v832 = vadd.f32 %v800, %v780
          %v833 = vadd.f32 %v831, %v829
          %v834 = vadd.f32 %v832, %v830
          %v835 = vld [vmem:[%s455] sm:$0x1]
          %vm836 = vcmp.gt.f32.partialorder %v835, 0.5
          %v837 = vsel %vm836, 1, 0
          %v838 = vperm.slane %v837, 0
          %vm839 = vcmp.eq.s32.totalorder %v838, 1
          %v840 = vsel %vm839, %v833, 1000000.0
          %v841 = vsel %vm839, %v834, 1000000.0
          %842 = vst [vmem:[%s425] sm:$0xff] %v840
          %843 = vst [vmem:[%s425 + $0x8] sm:$0xff] %v841
          %vm844 = vcmask 39936
          %v845 = vsel %vm844, %v698, -inf
          %846 = vmax.xlane.f32.xlu0 %v845
          %v847 = vpop.xlane.xlu0 %846
          %v848 = vsel %vm844, %v699, -inf
          %849 = vmax.xlane.f32.xlu0 %v848
          %v850 = vpop.xlane.xlu0 %849
          %851 = vst.msk [vmem:[%s465] sm:$0xff] %vm618, %v847
          %852 = vst.msk [vmem:[%s465 + $0x8] sm:$0xff] %vm618, %v850
        $region93: #{tpu_custom_call.1} parent=76 // pred_fallthru
          _
        %s853 = sand.u32 %s191, 1
        %s854 = scalar_lea.sflag [#allocation9], %s853
        %s855 = sand.u32 %s191, 1
        %s856 = smul.addr %s855, 16
        %s857 = scalar_lea.vmem [#allocation10], %s856
        %s858 = smul.u32 2, %s30
        %p859 = scmp.lt.s32.totalorder %s29, 1
        %s860 = scalar_select %p859, %s29, 1
        %p861 = scmp.lt.s32.totalorder %s858, 1
        %s862 = scalar_select %p861, %s858, 1
        %s863 = smul.addr %s860, 2
        %s864 = sadd.s32 %s862, %s863
        %s865 = smul.addr %s864, 8
        %s866 = scalar_lea.vmem %s6, %s865
        // Predicated region
        $region94: #{tpu_custom_call.1} parent=76 // pred_check
          %p867 = pneg %p201
        $region95: #{tpu_custom_call.1} parent=76 // pred_check_branch
          %869 = sbr.rel (%p867) target = $region97
        $region96: #{tpu_custom_call.1} parent=76 // pred_region
          %s870 = smul.u32 2, %s30
          %872 = vsyncadd %s854, 0
          %s873 = smul.addr %s29, 2
          %s874 = sadd.s32 %s870, %s873
          %s875 = smul.addr %s874, 8
          %s876 = scalar_lea.hbm %s5, %s875
          %s877 = sshll.u32 %s857, 4
          %s878 = int_to_ptr.vmem [resolvable:$true] %s877
          %s879 = sshll.u32 %s876, 4
          %s880 = int_to_ptr.hbm [resolvable:$true] %s879
          %885 = dma.vmem_to_hbm [thread:$0]  %s878, 256, %s880, %s854, 128, 128, 8
        $region97: #{tpu_custom_call.1} parent=76 // pred_fallthru
          _
        // Predicated region
        $region98: #{tpu_custom_call.1} parent=76 // pred_check
          %p886 = pneg %p229
        $region99: #{tpu_custom_call.1} parent=76 // pred_check_branch
          %888 = sbr.rel (%p886) target = $region101
        $region100: #{tpu_custom_call.1} parent=76 // pred_region
          %s889 = smul.u32 2, %s30
        $region101: #{tpu_custom_call.1} parent=76 // pred_fallthru
          _
      $region77: #{tpu_custom_call.1} parent=5 // pred_fallthru
        _
      %p890 = scmp.le.s32.totalorder 2, %s19
      // Predicated region
      $region102: #{tpu_custom_call.1} parent=5 // pred_check
        %p891 = pneg %p890
      $region103: #{tpu_custom_call.1} parent=5 // pred_check_branch
        %893 = sbr.rel (%p891) target = $region105
      $region104: #{tpu_custom_call.1} parent=5 // pred_region
        %s894 = ssub.s32 %s19, 2
        // Predicated region
        $region106: #{tpu_custom_call.1} parent=104 // pred_check
          %p895 = pneg %p207
        $region107: #{tpu_custom_call.1} parent=104 // pred_check_branch
          %897 = sbr.rel (%p895) target = $region109
        $region108: #{tpu_custom_call.1} parent=104 // pred_region
          %s898 = sand.u32 %s192, 1
          %s899 = scalar_lea.sflag [#allocation9], %s898
          %s900 = sand.u32 %s192, 1
          %s901 = smul.addr %s900, 16
          %s902 = scalar_lea.vmem [#allocation10], %s901
          %904 = dma.done %s899, 256
        $region109: #{tpu_custom_call.1} parent=104 // pred_fallthru
          _
        // Predicated region
        $region110: #{tpu_custom_call.1} parent=104 // pred_check
          %p905 = pneg %p235
        $region111: #{tpu_custom_call.1} parent=104 // pred_check_branch
          %907 = sbr.rel (%p905) target = $region113
        $region112: #{tpu_custom_call.1} parent=104 // pred_region
          %s908 = smul.u32 2, %s33
          %p909 = scmp.lt.s32.totalorder %s32, 1
          %s910 = scalar_select %p909, %s32, 1
          %p911 = scmp.lt.s32.totalorder %s908, 1
          %s912 = scalar_select %p911, %s908, 1
          %s913 = smul.addr %s910, 2
          %s914 = sadd.s32 %s912, %s913
          %s915 = smul.addr %s914, 8
          %s916 = scalar_lea.vmem %s6, %s915
        $region113: #{tpu_custom_call.1} parent=104 // pred_fallthru
          _
      $region105: #{tpu_custom_call.1} parent=5 // pred_fallthru
        _
    $region6: #{tpu_custom_call.1} parent=1 // loop_footer
      %s23 = sadd.s32 1, %s19
    $region7: #{tpu_custom_call.1} parent=1 // loop_footer_branch
      %18 = sbr.rel target = $region3
    $region8: #{tpu_custom_call.1} parent=1 // loop_exit
      _
    %917 = vsyncpa [#allocation8], 1
    %s918 = scalar_lea.sflag [#allocation8], 1
    %919 = vsyncpa %s918, 1
    %920 = vsyncpa [#allocation9], 1
    %s921 = scalar_lea.sflag [#allocation9], 1
    %922 = vsyncpa %s921, 1

</llo_original>
